<compile_context>
chip_gen: v6e
topology: v6e:2x2x1
jax: 0.10.0
libtpu: 0.0.40
codegen_flags: <defaults>
</compile_context>

<pallas_src>
import functools

import jax
import jax.numpy as jnp
from jax import lax
from jax.experimental import pallas as pl
from jax.experimental.pallas import tpu as pltpu


# ----------------------------------------------------------------------------
# Fused kernel: one grid step = one batch element, everything stays in VMEM.
# ----------------------------------------------------------------------------
def _fused_attention_kernel(x_ref, w_qkv_ref, b_qkv_ref, w_out_ref, b_out_ref,
                            o_ref, *, heads, dim_head, scale):
    in_dtype = x_ref.dtype
    inner = heads * dim_head

    x = x_ref[0]                                              # (N, C_in)

    # --- to_qkv: x @ W_qkv + b  (one MXU matmul, f32 accumulate) -------------
    qkv = jnp.dot(x, w_qkv_ref[...], preferred_element_type=jnp.float32)
    qkv = qkv + b_qkv_ref[...].astype(jnp.float32)            # (N, 3*inner)

    q = qkv[:, 0 * inner:1 * inner]                           # (N, inner)
    k = qkv[:, 1 * inner:2 * inner]
    v = qkv[:, 2 * inner:3 * inner]

    # --- per-head attention (heads unrolled at trace time) -------------------
    ctx_parts = []
    for h in range(heads):
        lo, hi = h * dim_head, (h + 1) * dim_head
        # fold the softmax scale into q once
        q_h = (q[:, lo:hi] * scale).astype(in_dtype)          # (N, D)
        k_h = k[:, lo:hi].astype(in_dtype)                    # (N, D)
        v_h = v[:, lo:hi].astype(in_dtype)                    # (N, D)

        # scores = q_h @ k_h^T without materializing a transpose
        s = lax.dot_general(q_h, k_h,
                            dimension_numbers=(((1,), (1,)), ((), ())),
                            preferred_element_type=jnp.float32)   # (N, N)

        # numerically-stable softmax in f32; divide goes to the EUP slot
        m = jnp.max(s, axis=-1, keepdims=True)
        p = jnp.exp(s - m)
        l = jnp.sum(p, axis=-1, keepdims=True)
        attn = p * pl.reciprocal(l, approx=True)

        ctx_parts.append(
            jnp.dot(attn.astype(in_dtype), v_h,
                    preferred_element_type=jnp.float32))      # (N, D)

    # rearrange 'b h n d -> b n (h d)' — lane-dense (N, inner) context in VMEM
    ctx = jnp.concatenate(ctx_parts, axis=-1)                 # (N, inner)

    # --- to_out: ctx @ W_out + b ---------------------------------------------
    out = jnp.dot(ctx.astype(in_dtype), w_out_ref[...],
                  preferred_element_type=jnp.float32)
    out = out + b_out_ref[...].astype(jnp.float32)            # (N, C_out)

    o_ref[0] = out.astype(o_ref.dtype)


# ----------------------------------------------------------------------------
# Wrapper
# ----------------------------------------------------------------------------
def attention_forward(x, params, *, heads, dim_head):
    """x: (B, N, input_dim) -> (B, N, output_dim)"""
    B, N, c_in = x.shape
    inner = heads * dim_head
    c_out = params["w_out"].shape[1]
    scale = dim_head ** (-0.5)

    kernel = functools.partial(
        _fused_attention_kernel, heads=heads, dim_head=dim_head, scale=scale)

    return pl.pallas_call(
        kernel,
        out_shape=jax.ShapeDtypeStruct((B, N, c_out), x.dtype),
        grid=(B,),
        in_specs=[
            pl.BlockSpec((1, N, c_in), lambda b: (b, 0, 0)),          # x (per batch)
            pl.BlockSpec((c_in, 3 * inner), lambda b: (0, 0)),        # W_qkv (shared)
            pl.BlockSpec((1, 3 * inner), lambda b: (0, 0)),           # b_qkv
            pl.BlockSpec((inner, c_out), lambda b: (0, 0)),           # W_out (shared)
            pl.BlockSpec((1, c_out), lambda b: (0, 0)),               # b_out
        ],
        out_specs=pl.BlockSpec((1, N, c_out), lambda b: (b, 0, 0)),
        compiler_params=pltpu.CompilerParams(
            dimension_semantics=("parallel",)),   # B>=2 keeps both v7x TCs busy
    )(x,
      params["w_qkv"], params["b_qkv"].reshape(1, 3 * inner),
      params["w_out"], params["b_out"].reshape(1, c_out))


# ----------------------------------------------------------------------------
# Pure-JAX reference (for a correctness sanity check)
# ----------------------------------------------------------------------------
def attention_reference(x, params, *, heads, dim_head):
    B, N, _ = x.shape
    inner = heads * dim_head
    scale = dim_head ** (-0.5)
    qkv = x @ params["w_qkv"] + params["b_qkv"]
    qkv = qkv.reshape(B, N, 3, heads, dim_head)
    q = jnp.transpose(qkv[:, :, 0], (0, 2, 1, 3))
    k = jnp.transpose(qkv[:, :, 1], (0, 2, 1, 3))
    v = jnp.transpose(qkv[:, :, 2], (0, 2, 1, 3))
    s = jnp.einsum("bhqd,bhkd->bhqk", q, k) * scale
    attn = jax.nn.softmax(s, axis=-1)
    out = jnp.einsum("bhqk,bhkd->bhqd", attn, v)
    out = jnp.transpose(out, (0, 2, 1, 3)).reshape(B, N, inner)
    return out @ params["w_out"] + params["b_out"]


def init_params(key, input_dim, output_dim, heads, dim_head):
    inner_dim = heads * dim_head
    k1, k2, k3, k4 = jax.random.split(key, 4)
    return {
        "w_qkv": 0.02 * jax.random.normal(k1, (input_dim, 3 * inner_dim), jnp.float32),
        "b_qkv": 0.02 * jax.random.normal(k2, (3 * inner_dim,), jnp.float32),
        "w_out": 0.02 * jax.random.normal(k3, (inner_dim, output_dim), jnp.float32),
        "b_out": 0.02 * jax.random.normal(k4, (output_dim,), jnp.float32),
    }


if __name__ == "__main__":
    # small shapes consistent with the module: batch=2, seq=8, input_dim=32
    B, N = 2, 8
    input_dim, output_dim = 32, 32
    heads, dim_head = 4, 16

    key = jax.random.PRNGKey(0)
    kx, kp = jax.random.split(key)
    x = jax.random.normal(kx, (B, N, input_dim), jnp.float32)
    params = init_params(kp, input_dim, output_dim, heads, dim_head)

    out = attention_forward(x, params, heads=heads, dim_head=dim_head)
    jax.block_until_ready(out)
    assert out.shape == (B, N, output_dim), out.shape

    # sanity check against the pure-JAX reference (generous tol: approx reciprocal)
    ref = attention_reference(x, params, heads=heads, dim_head=dim_head)
    assert jnp.allclose(out, ref, rtol=5e-2, atol=1e-3), \
        float(jnp.max(jnp.abs(out - ref)))

    print("KERNEL_OK")
</pallas_src>

<mosaic_0001>
module attributes {stable_mosaic.version = 11 : i64} {
  func.func @_fused_attention_kernel(%arg0: i32, %arg1: memref<1x8x32xf32, #tpu.memory_space<vmem>>, %arg2: memref<32x192xf32, #tpu.memory_space<vmem>>, %arg3: memref<1x192xf32, #tpu.memory_space<vmem>>, %arg4: memref<64x32xf32, #tpu.memory_space<vmem>>, %arg5: memref<1x32xf32, #tpu.memory_space<vmem>>, %arg6: memref<1x8x32xf32, #tpu.memory_space<vmem>>) attributes {dimension_semantics = [#tpu.dimension_semantics<parallel>], iteration_bounds = array<i64: 2>, scalar_prefetch = 0 : i64, scratch_operands = 0 : i64, tpu.core_type = #tpu.core_type<tc>, window_params = [{transform_indices = @transform_0, window_bounds = array<i64: 1, 8, 32>}, {pipeline_mode = #tpu.pipeline_mode<synchronous>, transform_indices = @transform_1, window_bounds = array<i64: 32, 192>}, {pipeline_mode = #tpu.pipeline_mode<synchronous>, transform_indices = @transform_2, window_bounds = array<i64: 1, 192>}, {pipeline_mode = #tpu.pipeline_mode<synchronous>, transform_indices = @transform_3, window_bounds = array<i64: 64, 32>}, {pipeline_mode = #tpu.pipeline_mode<synchronous>, transform_indices = @transform_4, window_bounds = array<i64: 1, 32>}, {transform_indices = @transform_5, window_bounds = array<i64: 1, 8, 32>}]} {
    %c0 = arith.constant 0 : index
    %c0_0 = arith.constant 0 : index
    %c0_1 = arith.constant 0 : index
    %0 = vector.load %arg1[%c0, %c0_0, %c0_1] : memref<1x8x32xf32, #tpu.memory_space<vmem>>, vector<1x8x32xf32>
    %1 = vector.shape_cast %0 : vector<1x8x32xf32> to vector<8x32xf32>
    %c0_2 = arith.constant 0 : index
    %c0_3 = arith.constant 0 : index
    %2 = vector.load %arg2[%c0_2, %c0_3] : memref<32x192xf32, #tpu.memory_space<vmem>>, vector<32x192xf32>
    %cst = arith.constant dense<0.000000e+00> : vector<8x192xf32>
    %3 = tpu.matmul %1, %2, %cst {dimension_numbers = #tpu.dot_dimension_numbers<[1], [0], [0], [1], [0, 0, 1, 1], [], []>} : vector<8x32xf32>, vector<32x192xf32>, vector<8x192xf32> -> vector<8x192xf32>
    %c0_4 = arith.constant 0 : index
    %c0_5 = arith.constant 0 : index
    %4 = vector.load %arg3[%c0_4, %c0_5] : memref<1x192xf32, #tpu.memory_space<vmem>>, vector<1x192xf32>
    %5 = vector.broadcast %4 : vector<1x192xf32> to vector<8x192xf32>
    %6 = arith.addf %3, %5 : vector<8x192xf32>
    %7 = vector.extract_strided_slice %6 {offsets = [0, 0], sizes = [8, 64], strides = [1, 1]} : vector<8x192xf32> to vector<8x64xf32>
    %8 = vector.extract_strided_slice %6 {offsets = [0, 64], sizes = [8, 64], strides = [1, 1]} : vector<8x192xf32> to vector<8x64xf32>
    %9 = vector.extract_strided_slice %6 {offsets = [0, 128], sizes = [8, 64], strides = [1, 1]} : vector<8x192xf32> to vector<8x64xf32>
    %10 = vector.extract_strided_slice %7 {offsets = [0, 0], sizes = [8, 16], strides = [1, 1]} : vector<8x64xf32> to vector<8x16xf32>
    %cst_6 = arith.constant 2.500000e-01 : f32
    %11 = vector.broadcast %cst_6 : f32 to vector<8x16xf32>
    %12 = arith.mulf %10, %11 : vector<8x16xf32>
    %13 = vector.extract_strided_slice %8 {offsets = [0, 0], sizes = [8, 16], strides = [1, 1]} : vector<8x64xf32> to vector<8x16xf32>
    %14 = vector.extract_strided_slice %9 {offsets = [0, 0], sizes = [8, 16], strides = [1, 1]} : vector<8x64xf32> to vector<8x16xf32>
    %cst_7 = arith.constant dense<0.000000e+00> : vector<8x8xf32>
    %15 = tpu.matmul %12, %13, %cst_7 {dimension_numbers = #tpu.dot_dimension_numbers<[1], [1], [0], [0], [0, 0, 1, 0], [], []>} : vector<8x16xf32>, vector<8x16xf32>, vector<8x8xf32> -> vector<8x8xf32>
    %cst_8 = arith.constant dense<0xFF800000> : vector<8xf32>
    %16 = vector.multi_reduction <maximumf>, %15, %cst_8 [1] : vector<8x8xf32> to vector<8xf32>
    %17 = vector.shape_cast %16 : vector<8xf32> to vector<8x1xf32>
    %18 = vector.broadcast %17 : vector<8x1xf32> to vector<8x8xf32>
    %19 = arith.subf %15, %18 : vector<8x8xf32>
    %20 = math.exp %19 : vector<8x8xf32>
    %cst_9 = arith.constant dense<0.000000e+00> : vector<8xf32>
    %21 = vector.multi_reduction <add>, %20, %cst_9 [1] : vector<8x8xf32> to vector<8xf32>
    %22 = vector.shape_cast %21 : vector<8xf32> to vector<8x1xf32>
    %23 = tpu.reciprocal %22 {approx = true} : vector<8x1xf32> -> vector<8x1xf32>
    %24 = vector.broadcast %23 : vector<8x1xf32> to vector<8x8xf32>
    %25 = arith.mulf %20, %24 : vector<8x8xf32>
    %cst_10 = arith.constant dense<0.000000e+00> : vector<8x16xf32>
    %26 = tpu.matmul %25, %14, %cst_10 {dimension_numbers = #tpu.dot_dimension_numbers<[1], [0], [0], [1], [0, 0, 1, 1], [], []>} : vector<8x8xf32>, vector<8x16xf32>, vector<8x16xf32> -> vector<8x16xf32>
    %27 = vector.extract_strided_slice %7 {offsets = [0, 16], sizes = [8, 16], strides = [1, 1]} : vector<8x64xf32> to vector<8x16xf32>
    %cst_11 = arith.constant 2.500000e-01 : f32
    %28 = vector.broadcast %cst_11 : f32 to vector<8x16xf32>
    %29 = arith.mulf %27, %28 : vector<8x16xf32>
    %30 = vector.extract_strided_slice %8 {offsets = [0, 16], sizes = [8, 16], strides = [1, 1]} : vector<8x64xf32> to vector<8x16xf32>
    %31 = vector.extract_strided_slice %9 {offsets = [0, 16], sizes = [8, 16], strides = [1, 1]} : vector<8x64xf32> to vector<8x16xf32>
    %cst_12 = arith.constant dense<0.000000e+00> : vector<8x8xf32>
    %32 = tpu.matmul %29, %30, %cst_12 {dimension_numbers = #tpu.dot_dimension_numbers<[1], [1], [0], [0], [0, 0, 1, 0], [], []>} : vector<8x16xf32>, vector<8x16xf32>, vector<8x8xf32> -> vector<8x8xf32>
    %cst_13 = arith.constant dense<0xFF800000> : vector<8xf32>
    %33 = vector.multi_reduction <maximumf>, %32, %cst_13 [1] : vector<8x8xf32> to vector<8xf32>
    %34 = vector.shape_cast %33 : vector<8xf32> to vector<8x1xf32>
    %35 = vector.broadcast %34 : vector<8x1xf32> to vector<8x8xf32>
    %36 = arith.subf %32, %35 : vector<8x8xf32>
    %37 = math.exp %36 : vector<8x8xf32>
    %cst_14 = arith.constant dense<0.000000e+00> : vector<8xf32>
    %38 = vector.multi_reduction <add>, %37, %cst_14 [1] : vector<8x8xf32> to vector<8xf32>
    %39 = vector.shape_cast %38 : vector<8xf32> to vector<8x1xf32>
    %40 = tpu.reciprocal %39 {approx = true} : vector<8x1xf32> -> vector<8x1xf32>
    %41 = vector.broadcast %40 : vector<8x1xf32> to vector<8x8xf32>
    %42 = arith.mulf %37, %41 : vector<8x8xf32>
    %cst_15 = arith.constant dense<0.000000e+00> : vector<8x16xf32>
    %43 = tpu.matmul %42, %31, %cst_15 {dimension_numbers = #tpu.dot_dimension_numbers<[1], [0], [0], [1], [0, 0, 1, 1], [], []>} : vector<8x8xf32>, vector<8x16xf32>, vector<8x16xf32> -> vector<8x16xf32>
    %44 = vector.extract_strided_slice %7 {offsets = [0, 32], sizes = [8, 16], strides = [1, 1]} : vector<8x64xf32> to vector<8x16xf32>
    %cst_16 = arith.constant 2.500000e-01 : f32
    %45 = vector.broadcast %cst_16 : f32 to vector<8x16xf32>
    %46 = arith.mulf %44, %45 : vector<8x16xf32>
    %47 = vector.extract_strided_slice %8 {offsets = [0, 32], sizes = [8, 16], strides = [1, 1]} : vector<8x64xf32> to vector<8x16xf32>
    %48 = vector.extract_strided_slice %9 {offsets = [0, 32], sizes = [8, 16], strides = [1, 1]} : vector<8x64xf32> to vector<8x16xf32>
    %cst_17 = arith.constant dense<0.000000e+00> : vector<8x8xf32>
    %49 = tpu.matmul %46, %47, %cst_17 {dimension_numbers = #tpu.dot_dimension_numbers<[1], [1], [0], [0], [0, 0, 1, 0], [], []>} : vector<8x16xf32>, vector<8x16xf32>, vector<8x8xf32> -> vector<8x8xf32>
    %cst_18 = arith.constant dense<0xFF800000> : vector<8xf32>
    %50 = vector.multi_reduction <maximumf>, %49, %cst_18 [1] : vector<8x8xf32> to vector<8xf32>
    %51 = vector.shape_cast %50 : vector<8xf32> to vector<8x1xf32>
    %52 = vector.broadcast %51 : vector<8x1xf32> to vector<8x8xf32>
    %53 = arith.subf %49, %52 : vector<8x8xf32>
    %54 = math.exp %53 : vector<8x8xf32>
    %cst_19 = arith.constant dense<0.000000e+00> : vector<8xf32>
    %55 = vector.multi_reduction <add>, %54, %cst_19 [1] : vector<8x8xf32> to vector<8xf32>
    %56 = vector.shape_cast %55 : vector<8xf32> to vector<8x1xf32>
    %57 = tpu.reciprocal %56 {approx = true} : vector<8x1xf32> -> vector<8x1xf32>
    %58 = vector.broadcast %57 : vector<8x1xf32> to vector<8x8xf32>
    %59 = arith.mulf %54, %58 : vector<8x8xf32>
    %cst_20 = arith.constant dense<0.000000e+00> : vector<8x16xf32>
    %60 = tpu.matmul %59, %48, %cst_20 {dimension_numbers = #tpu.dot_dimension_numbers<[1], [0], [0], [1], [0, 0, 1, 1], [], []>} : vector<8x8xf32>, vector<8x16xf32>, vector<8x16xf32> -> vector<8x16xf32>
    %61 = vector.extract_strided_slice %7 {offsets = [0, 48], sizes = [8, 16], strides = [1, 1]} : vector<8x64xf32> to vector<8x16xf32>
    %cst_21 = arith.constant 2.500000e-01 : f32
    %62 = vector.broadcast %cst_21 : f32 to vector<8x16xf32>
    %63 = arith.mulf %61, %62 : vector<8x16xf32>
    %64 = vector.extract_strided_slice %8 {offsets = [0, 48], sizes = [8, 16], strides = [1, 1]} : vector<8x64xf32> to vector<8x16xf32>
    %65 = vector.extract_strided_slice %9 {offsets = [0, 48], sizes = [8, 16], strides = [1, 1]} : vector<8x64xf32> to vector<8x16xf32>
    %cst_22 = arith.constant dense<0.000000e+00> : vector<8x8xf32>
    %66 = tpu.matmul %63, %64, %cst_22 {dimension_numbers = #tpu.dot_dimension_numbers<[1], [1], [0], [0], [0, 0, 1, 0], [], []>} : vector<8x16xf32>, vector<8x16xf32>, vector<8x8xf32> -> vector<8x8xf32>
    %cst_23 = arith.constant dense<0xFF800000> : vector<8xf32>
    %67 = vector.multi_reduction <maximumf>, %66, %cst_23 [1] : vector<8x8xf32> to vector<8xf32>
    %68 = vector.shape_cast %67 : vector<8xf32> to vector<8x1xf32>
    %69 = vector.broadcast %68 : vector<8x1xf32> to vector<8x8xf32>
    %70 = arith.subf %66, %69 : vector<8x8xf32>
    %71 = math.exp %70 : vector<8x8xf32>
    %cst_24 = arith.constant dense<0.000000e+00> : vector<8xf32>
    %72 = vector.multi_reduction <add>, %71, %cst_24 [1] : vector<8x8xf32> to vector<8xf32>
    %73 = vector.shape_cast %72 : vector<8xf32> to vector<8x1xf32>
    %74 = tpu.reciprocal %73 {approx = true} : vector<8x1xf32> -> vector<8x1xf32>
    %75 = vector.broadcast %74 : vector<8x1xf32> to vector<8x8xf32>
    %76 = arith.mulf %71, %75 : vector<8x8xf32>
    %cst_25 = arith.constant dense<0.000000e+00> : vector<8x16xf32>
    %77 = tpu.matmul %76, %65, %cst_25 {dimension_numbers = #tpu.dot_dimension_numbers<[1], [0], [0], [1], [0, 0, 1, 1], [], []>} : vector<8x8xf32>, vector<8x16xf32>, vector<8x16xf32> -> vector<8x16xf32>
    %78 = tpu.concatenate %26, %43, %60, %77 in 1 : vector<8x16xf32>, vector<8x16xf32>, vector<8x16xf32>, vector<8x16xf32> -> vector<8x64xf32>
    %c0_26 = arith.constant 0 : index
    %c0_27 = arith.constant 0 : index
    %79 = vector.load %arg4[%c0_26, %c0_27] : memref<64x32xf32, #tpu.memory_space<vmem>>, vector<64x32xf32>
    %cst_28 = arith.constant dense<0.000000e+00> : vector<8x32xf32>
    %80 = tpu.matmul %78, %79, %cst_28 {dimension_numbers = #tpu.dot_dimension_numbers<[1], [0], [0], [1], [0, 0, 1, 1], [], []>} : vector<8x64xf32>, vector<64x32xf32>, vector<8x32xf32> -> vector<8x32xf32>
    %c0_29 = arith.constant 0 : index
    %c0_30 = arith.constant 0 : index
    %81 = vector.load %arg5[%c0_29, %c0_30] : memref<1x32xf32, #tpu.memory_space<vmem>>, vector<1x32xf32>
    %82 = vector.broadcast %81 : vector<1x32xf32> to vector<8x32xf32>
    %83 = arith.addf %80, %82 : vector<8x32xf32>
    %c0_31 = arith.constant 0 : index
    %c0_32 = arith.constant 0 : index
    %c0_33 = arith.constant 0 : index
    %84 = vector.load %arg6[%c0_31, %c0_32, %c0_33] : memref<1x8x32xf32, #tpu.memory_space<vmem>>, vector<1x8x32xf32>
    %85 = vector.shape_cast %84 : vector<1x8x32xf32> to vector<8x32xf32>
    %86 = vector.shape_cast %83 : vector<8x32xf32> to vector<1x8x32xf32>
    tpu.vector_store %arg6[%c0_31, %c0_32, %c0_33], %86 {strides = array<i32>} : memref<1x8x32xf32, #tpu.memory_space<vmem>>, vector<1x8x32xf32>,
    return
  }
  func.func @transform_0(%arg0: i32) -> (i32, i32, i32) {
    %c0_i32 = arith.constant 0 : i32
    %c0_i32_0 = arith.constant 0 : i32
    %c0_i32_1 = arith.constant 0 : i32
    return %arg0, %c0_i32, %c0_i32_0 : i32, i32, i32
  }
  func.func @transform_1(%arg0: i32) -> (i32, i32) {
    %c0_i32 = arith.constant 0 : i32
    %c0_i32_0 = arith.constant 0 : i32
    %c0_i32_1 = arith.constant 0 : i32
    return %c0_i32, %c0_i32_0 : i32, i32
  }
  func.func @transform_2(%arg0: i32) -> (i32, i32) {
    %c0_i32 = arith.constant 0 : i32
    %c0_i32_0 = arith.constant 0 : i32
    %c0_i32_1 = arith.constant 0 : i32
    return %c0_i32, %c0_i32_0 : i32, i32
  }
  func.func @transform_3(%arg0: i32) -> (i32, i32) {
    %c0_i32 = arith.constant 0 : i32
    %c0_i32_0 = arith.constant 0 : i32
    %c0_i32_1 = arith.constant 0 : i32
    return %c0_i32, %c0_i32_0 : i32, i32
  }
  func.func @transform_4(%arg0: i32) -> (i32, i32) {
    %c0_i32 = arith.constant 0 : i32
    %c0_i32_0 = arith.constant 0 : i32
    %c0_i32_1 = arith.constant 0 : i32
    return %c0_i32, %c0_i32_0 : i32, i32
  }
  func.func @transform_5(%arg0: i32) -> (i32, i32, i32) {
    %c0_i32 = arith.constant 0 : i32
    %c0_i32_0 = arith.constant 0 : i32
    %c0_i32_1 = arith.constant 0 : i32
    return %arg0, %c0_i32, %c0_i32_0 : i32, i32, i32
  }
}

</mosaic_0001>

<llo_original>
// kernel: tpu_custom_call.1
$region0: #{tpu_custom_call.1}
  #allocation0 [shape = 'u32[]', space=smem, size = 0x4, offset = 0x4, fixed_abs, tag = 'smem constant byte address 0x4 - core index']
  #allocation1 [shape = 'u32[144,128]{1,0:T(1,128)}', space=vmem, size = 0x12000, scoped, tag = 'internal scratch']
  %s0 = inlined_call_operand.vmem [shape: f32[2,8,32], index: 0, kind: input, shape index: {}]
  %s1 = inlined_call_operand.vmem [shape: f32[32,192], index: 1, kind: input, shape index: {}]
  %s2 = inlined_call_operand.vmem [shape: f32[1,192], index: 2, kind: input, shape index: {}]
  %s3 = inlined_call_operand.vmem [shape: f32[64,32], index: 3, kind: input, shape index: {}]
  %s4 = inlined_call_operand.vmem [shape: f32[1,32], index: 4, kind: input, shape index: {}]
  %s5 = inlined_call_operand.hbm [shape: f32[2,8,32], index: 5, kind: output, shape index: {}]
  %s6 = sld [smem:[#allocation0]]
  $region53: #{tpu_custom_call.1} parent=0
    _
  %s8 = ssub.s32 1, %s6
  %s9 = scalar_select 0, %s8, %s6
  $region1: #{tpu_custom_call.1} parent=0
    #allocation2 [shape = 'u8[8192]{0}', space=vmem, size = 0x2000, scoped, tag = 'output window, operand 0']
    #allocation3 [shape = 's32[2]{0}', space=sflag, size = 0x8, scoped, tag = 'scoped memory for tpu_custom_call.1']
    %10 = vsyncpa [#allocation3], 0
    %s11 = scalar_lea.sflag [#allocation3], 1
    %12 = vsyncpa %s11, 0
    loop: start=0, step=1, limit=4
    $region2: #{tpu_custom_call.1} parent=1 // loop_pre_header
      _
    $region3: #{tpu_custom_call.1} parent=1 // loop_header
      %s14 = sphi 0, %s18
      %p15 = scmp.ge.s32.totalorder %s14, 4
      %s24 = sphi 0, %s26
      %s27 = sphi 0, %s24
      %s28 = sphi 0, %s27
      %s44 = sphi 0, %s28
      %s48 = sphi 0, %s48
      %s50 = sphi 0, %s48
      %s51 = sphi 0, %s50
      %s65 = sphi 0, %s51
      %s69 = sphi 0, %s69
      %s71 = sphi 0, %s69
      %s72 = sphi 0, %s71
      %s86 = sphi 0, %s72
      %s90 = sphi 0, %s90
      %s92 = sphi 0, %s90
      %s93 = sphi 0, %s92
      %s107 = sphi 0, %s93
      %s111 = sphi 0, %s111
      %s113 = sphi 0, %s111
      %s114 = sphi 0, %s113
      %s128 = sphi 0, %s114
      %s134 = sphi 0, %s136
      %s137 = sphi 0, %s134
      %s138 = sphi 0, %s137
      %s154 = sphi 0, %s138
    $region4: #{tpu_custom_call.1} parent=1 // loop_header_branch
      %17 = sbr.rel (%p15) target = $region8
    $region5: #{tpu_custom_call.1} parent=1 // loop_body
      %s19 = ssub.s32 %s14, 1
      %s20 = ssub.s32 %s14, 2
      %s21 = sadd.s32 %s14, 1
      %s22 = ssub.s32 %s14, %s21
      %p23 = scmp.eq.s32.totalorder %s22, 0
      %s25 = sadd.s32 %s24, 1
      %s26 = scalar_select %p23, %s24, %s25
      %p29 = pneg %p23
      %p30 = scmp.eq.s32.totalorder %s14, 1
      %p31 = por %p29, %p30
      %p32 = scmp.ne.s32.totalorder %s24, %s27
      %p33 = scmp.eq.s32.totalorder %s14, 0
      %p34 = por %p32, %p33
      %p35 = scmp.ne.s32.totalorder %s24, %s27
      %p36 = scmp.eq.s32.totalorder %s19, 1
      %p37 = por %p35, %p36
      %p38 = scmp.ne.s32.totalorder %s27, %s28
      %p39 = scmp.eq.s32.totalorder %s19, 0
      %p40 = por %p38, %p39
      %p41 = scmp.ne.s32.totalorder %s27, %s28
      %p42 = scmp.eq.s32.totalorder %s20, 1
      %p43 = por %p41, %p42
      %p45 = scmp.ne.s32.totalorder %s28, %s44
      %p46 = scmp.eq.s32.totalorder %s20, 0
      %p47 = por %p45, %p46
      %s49 = sadd.s32 %s48, 1
      %p52 = scmp.eq.s32.totalorder %s14, 1
      %p53 = scmp.ne.s32.totalorder %s48, %s50
      %p54 = scmp.eq.s32.totalorder %s14, 0
      %p55 = por %p53, %p54
      %p56 = scmp.ne.s32.totalorder %s48, %s50
      %p57 = scmp.eq.s32.totalorder %s19, 1
      %p58 = por %p56, %p57
      %p59 = scmp.ne.s32.totalorder %s50, %s51
      %p60 = scmp.eq.s32.totalorder %s19, 0
      %p61 = por %p59, %p60
      %p62 = scmp.ne.s32.totalorder %s50, %s51
      %p63 = scmp.eq.s32.totalorder %s20, 1
      %p64 = por %p62, %p63
      %p66 = scmp.ne.s32.totalorder %s51, %s65
      %p67 = scmp.eq.s32.totalorder %s20, 0
      %p68 = por %p66, %p67
      %s70 = sadd.s32 %s69, 1
      %p73 = scmp.eq.s32.totalorder %s14, 1
      %p74 = scmp.ne.s32.totalorder %s69, %s71
      %p75 = scmp.eq.s32.totalorder %s14, 0
      %p76 = por %p74, %p75
      %p77 = scmp.ne.s32.totalorder %s69, %s71
      %p78 = scmp.eq.s32.totalorder %s19, 1
      %p79 = por %p77, %p78
      %p80 = scmp.ne.s32.totalorder %s71, %s72
      %p81 = scmp.eq.s32.totalorder %s19, 0
      %p82 = por %p80, %p81
      %p83 = scmp.ne.s32.totalorder %s71, %s72
      %p84 = scmp.eq.s32.totalorder %s20, 1
      %p85 = por %p83, %p84
      %p87 = scmp.ne.s32.totalorder %s72, %s86
      %p88 = scmp.eq.s32.totalorder %s20, 0
      %p89 = por %p87, %p88
      %s91 = sadd.s32 %s90, 1
      %p94 = scmp.eq.s32.totalorder %s14, 1
      %p95 = scmp.ne.s32.totalorder %s90, %s92
      %p96 = scmp.eq.s32.totalorder %s14, 0
      %p97 = por %p95, %p96
      %p98 = scmp.ne.s32.totalorder %s90, %s92
      %p99 = scmp.eq.s32.totalorder %s19, 1
      %p100 = por %p98, %p99
      %p101 = scmp.ne.s32.totalorder %s92, %s93
      %p102 = scmp.eq.s32.totalorder %s19, 0
      %p103 = por %p101, %p102
      %p104 = scmp.ne.s32.totalorder %s92, %s93
      %p105 = scmp.eq.s32.totalorder %s20, 1
      %p106 = por %p104, %p105
      %p108 = scmp.ne.s32.totalorder %s93, %s107
      %p109 = scmp.eq.s32.totalorder %s20, 0
      %p110 = por %p108, %p109
      %s112 = sadd.s32 %s111, 1
      %p115 = scmp.eq.s32.totalorder %s14, 1
      %p116 = scmp.ne.s32.totalorder %s111, %s113
      %p117 = scmp.eq.s32.totalorder %s14, 0
      %p118 = por %p116, %p117
      %p119 = scmp.ne.s32.totalorder %s111, %s113
      %p120 = scmp.eq.s32.totalorder %s19, 1
      %p121 = por %p119, %p120
      %p122 = scmp.ne.s32.totalorder %s113, %s114
      %p123 = scmp.eq.s32.totalorder %s19, 0
      %p124 = por %p122, %p123
      %p125 = scmp.ne.s32.totalorder %s113, %s114
      %p126 = scmp.eq.s32.totalorder %s20, 1
      %p127 = por %p125, %p126
      %p129 = scmp.ne.s32.totalorder %s114, %s128
      %p130 = scmp.eq.s32.totalorder %s20, 0
      %p131 = por %p129, %p130
      %s132 = ssub.s32 %s14, %s21
      %p133 = scmp.eq.s32.totalorder %s132, 0
      %s135 = sadd.s32 %s134, 1
      %s136 = scalar_select %p133, %s134, %s135
      %p139 = pneg %p133
      %p140 = scmp.eq.s32.totalorder %s14, 1
      %p141 = por %p139, %p140
      %p142 = scmp.ne.s32.totalorder %s134, %s137
      %p143 = scmp.eq.s32.totalorder %s14, 0
      %p144 = por %p142, %p143
      %p145 = scmp.ne.s32.totalorder %s134, %s137
      %p146 = scmp.eq.s32.totalorder %s19, 1
      %p147 = por %p145, %p146
      %p148 = scmp.ne.s32.totalorder %s137, %s138
      %p149 = scmp.eq.s32.totalorder %s19, 0
      %p150 = por %p148, %p149
      %p151 = scmp.ne.s32.totalorder %s137, %s138
      %p152 = scmp.eq.s32.totalorder %s20, 1
      %p153 = por %p151, %p152
      %p155 = scmp.ne.s32.totalorder %s138, %s154
      %p156 = scmp.eq.s32.totalorder %s20, 0
      %p157 = por %p155, %p156
      %p158 = scmp.le.s32.totalorder 1, %s14
      %p159 = scmp.lt.s32.totalorder %s14, 3
      %p160 = pnand %p158, %p159
      %p161 = pneg %p160
      // Predicated region
      $region9: #{tpu_custom_call.1} parent=5 // pred_check
        _
      $region10: #{tpu_custom_call.1} parent=5 // pred_check_branch
        %163 = sbr.rel (%p160) target = $region12
      $region11: #{tpu_custom_call.1} parent=5 // pred_region
        %s164 = ssub.s32 %s14, 1
        // Predicated region
        $region13: #{tpu_custom_call.1} parent=11 // pred_check
          %p165 = pneg %p61
        $region14: #{tpu_custom_call.1} parent=11 // pred_check_branch
          %167 = sbr.rel (%p165) target = $region16
        $region15: #{tpu_custom_call.1} parent=11 // pred_region
          _
        $region16: #{tpu_custom_call.1} parent=11 // pred_fallthru
          _
        // Predicated region
        $region17: #{tpu_custom_call.1} parent=11 // pred_check
          %p168 = pneg %p82
        $region18: #{tpu_custom_call.1} parent=11 // pred_check_branch
          %170 = sbr.rel (%p168) target = $region20
        $region19: #{tpu_custom_call.1} parent=11 // pred_region
          _
        $region20: #{tpu_custom_call.1} parent=11 // pred_fallthru
          _
        // Predicated region
        $region21: #{tpu_custom_call.1} parent=11 // pred_check
          %p171 = pneg %p103
        $region22: #{tpu_custom_call.1} parent=11 // pred_check_branch
          %173 = sbr.rel (%p171) target = $region24
        $region23: #{tpu_custom_call.1} parent=11 // pred_region
          _
        $region24: #{tpu_custom_call.1} parent=11 // pred_fallthru
          _
        // Predicated region
        $region25: #{tpu_custom_call.1} parent=11 // pred_check
          %p174 = pneg %p124
        $region26: #{tpu_custom_call.1} parent=11 // pred_check_branch
          %176 = sbr.rel (%p174) target = $region28
        $region27: #{tpu_custom_call.1} parent=11 // pred_region
          _
        $region28: #{tpu_custom_call.1} parent=11 // pred_fallthru
          _
      $region12: #{tpu_custom_call.1} parent=5 // pred_fallthru
        _
      %p177 = scmp.lt.s32.totalorder %s14, 2
      // Predicated region
      $region29: #{tpu_custom_call.1} parent=5 // pred_check
        %p178 = pneg %p177
      $region30: #{tpu_custom_call.1} parent=5 // pred_check_branch
        %180 = sbr.rel (%p178) target = $region32
      $region31: #{tpu_custom_call.1} parent=5 // pred_region
        // Predicated region
        $region33: #{tpu_custom_call.1} parent=31 // pred_check
          %p181 = pneg %p34
        $region34: #{tpu_custom_call.1} parent=31 // pred_check_branch
          %183 = sbr.rel (%p181) target = $region36
        $region35: #{tpu_custom_call.1} parent=31 // pred_region
          %p184 = scmp.lt.s32.totalorder %s14, 1
          %s185 = scalar_select %p184, %s14, 1
          %s186 = smul.addr %s185, 8
          %s187 = scalar_lea.vmem %s0, %s186
        $region36: #{tpu_custom_call.1} parent=31 // pred_fallthru
          _
      $region32: #{tpu_custom_call.1} parent=5 // pred_fallthru
        _
      %p188 = scmp.le.s32.totalorder 1, %s14
      %p189 = scmp.lt.s32.totalorder %s14, 3
      %p190 = pnand %p188, %p189
      %p191 = pneg %p190
      // Predicated region
      $region37: #{tpu_custom_call.1} parent=5 // pred_check
        _
      $region38: #{tpu_custom_call.1} parent=5 // pred_check_branch
        %193 = sbr.rel (%p190) target = $region40
      $region39: #{tpu_custom_call.1} parent=5 // pred_region
        %s194 = ssub.s32 %s14, 1
        %p195 = scmp.lt.s32.totalorder %s19, 1
        %s196 = scalar_select %p195, %s19, 1
        %s197 = smul.addr %s196, 8
        %s198 = scalar_lea.vmem %s0, %s197
        %p199 = pneg %p40
        %p200 = pneg %p37
        %p201 = pneg %p61
        %p202 = pneg %p58
        %p203 = pneg %p82
        %p204 = pneg %p79
        %p205 = pneg %p103
        %p206 = pneg %p100
        %p207 = pneg %p124
        %p208 = pneg %p121
        %p209 = pneg %p150
        %p210 = pneg %p147
        %s211 = sand.u32 %s137, 1
        %s212 = scalar_lea.sflag [#allocation3], %s211
        %s213 = sand.u32 %s137, 1
        %s214 = smul.addr %s213, 8
        %s215 = scalar_lea.vmem [#allocation2], %s214
        %p216 = scmp.lt.s32.totalorder %s19, 1
        %s217 = scalar_select %p216, %s19, 1
        %s218 = smul.addr %s217, 8
        %s219 = scalar_lea.vmem %s0, %s218
        %v220 = vld [vmem:[%s219] sm:$0xff]
        %v221 = vld [vmem:[%s1] sm:$0xff]
        %v222 = vld [vmem:[%s1 + $0x8] sm:$0xff]
        %v223 = vld [vmem:[%s1 + $0x10] sm:$0xff]
        %v224 = vld [vmem:[%s1 + $0x18] sm:$0xff]
        %v225 = vld [vmem:[%s1 + $0x20] sm:$0xff]
        %v226 = vld [vmem:[%s1 + $0x28] sm:$0xff]
        %v227 = vld [vmem:[%s1 + $0x30] sm:$0xff]
        %v228 = vld [vmem:[%s1 + $0x38] sm:$0xff]
        %v229 = vld [vmem:[%s2] sm:$0x3]
        %v231 = vlaneseq
        %v232 = vshrl.u32 %v231, 7
        %v233 = vsub.s32 0, %v232
        %v234 = vrot.slane %v229, %v233
        %v235 = vlaneseq
        %v236 = vshrl.u32 %v235, 7
        %v237 = vsub.s32 1, %v236
        %v238 = vrot.slane %v229, %v237
        %vm241 = vcmask 261120
        %v243 = vsel %vm241, %v220, 0
        %245 = vmatprep.subr.mxu0 0.0
        %246 = vmatpush1.msra.mxu0 0.0
        %247 = vmatprep.subr.mxu0 0.0
        %248 = vmatpush1.msra.mxu0 0.0
        %249 = vmatprep.subr.mxu0 0.0
        %250 = vmatpush1.msra.mxu0 0.0
        %251 = vmatprep.subr.mxu0 0.0
        %252 = vmatpush1.msra.mxu0 0.0
        %253 = vmatprep.subr.mxu0 0.0
        %254 = vmatpush1.msra.mxu0 0.0
        %255 = vmatprep.subr.mxu0 0.0
        %256 = vmatpush1.msra.mxu0 0.0
        %257 = vmatprep.subr.mxu0 0.0
        %258 = vmatpush1.msra.mxu0 0.0
        %259 = vmatprep.subr.mxu0 0.0
        %260 = vmatpush1.msra.mxu0 0.0
        %261 = vmatprep.subr.mxu0 0.0
        %262 = vmatpush1.msra.mxu0 0.0
        %263 = vmatprep.subr.mxu0 0.0
        %264 = vmatpush1.msra.mxu0 0.0
        %265 = vmatprep.subr.mxu0 0.0
        %266 = vmatpush1.msra.mxu0 0.0
        %267 = vmatprep.subr.mxu0 0.0
        %268 = vmatpush1.msra.mxu0 0.0
        %269 = vmatprep.subr.mxu0 %v228
        %270 = vmatpush1.msra.mxu0 %v227
        %271 = vmatprep.subr.mxu0 %v226
        %272 = vmatpush1.msra.mxu0 %v225
        %273 = vmatprep.subr.mxu0 %v224
        %274 = vmatpush1.msra.mxu0 %v223
        %275 = vmatprep.subr.mxu0 %v222
        %276 = vmatpush1.msra.mxu0 %v221
        %277 = vmatprep.subr.mxu0 0.0
        %278 = vmatpush2.msra.mxu0 0.0
        %279 = vmatprep.subr.mxu0 0.0
        %280 = vmatpush2.msra.mxu0 0.0
        %281 = vmatprep.subr.mxu0 0.0
        %282 = vmatpush2.msra.mxu0 0.0
        %283 = vmatprep.subr.mxu0 0.0
        %284 = vmatpush2.msra.mxu0 0.0
        %285 = vmatprep.subr.mxu0 0.0
        %286 = vmatpush2.msra.mxu0 0.0
        %287 = vmatprep.subr.mxu0 0.0
        %288 = vmatpush2.msra.mxu0 0.0
        %289 = vmatprep.subr.mxu0 0.0
        %290 = vmatpush2.msra.mxu0 0.0
        %291 = vmatprep.subr.mxu0 0.0
        %292 = vmatpush2.msra.mxu0 0.0
        %293 = vmatprep.subr.mxu0 0.0
        %294 = vmatpush2.msra.mxu0 0.0
        %295 = vmatprep.subr.mxu0 0.0
        %296 = vmatpush2.msra.mxu0 0.0
        %297 = vmatprep.subr.mxu0 0.0
        %298 = vmatpush2.msra.mxu0 0.0
        %299 = vmatprep.subr.mxu0 0.0
        %300 = vmatpush2.msra.mxu0 0.0
        %301 = vmatprep.subr.mxu0 0.0
        %302 = vmatpush2.msra.mxu0 0.0
        %303 = vmatprep.subr.mxu0 0.0
        %304 = vmatpush2.msra.mxu0 0.0
        %305 = vmatprep.subr.mxu0 0.0
        %306 = vmatpush2.msra.mxu0 0.0
        %307 = vmatprep.subr.mxu0 0.0
        %308 = vmatpush2.msra.mxu0 0.0
        %309 = vmatprep.mubr.f32.mxu0 0.0
        %310 = vmatmul.mubr.f32.gmra.mxu0 %v243
        %v311 = vpop.f32.mrf.mxu0
        %v312 = vadd.f32 %v234, %v311
        %v313 = vpop.f32.mrf.mxu0
        %v314 = vadd.f32 %v238, %v313
        %315 = vdwg.mxu0
        %v316 = vmul.f32 %v312, 0.25
        %318 = vrot.lane.b32.xlu0 %v312, 64
        %v319 = vpop.permute.xlu0 %318
        %vm320 = vcmask 130048
        %v322 = vsel %vm320, %v316, 0
        %v324 = vsel %vm320, %v319, 0
        %326 = vmatprep.subr.mxu0 0.0
        %327 = vmatpush1.xpose.msra.mxu0 0.0
        %328 = vmatprep.subr.mxu0 0.0
        %329 = vmatpush1.xpose.msra.mxu0 0.0
        %330 = vmatprep.subr.mxu0 0.0
        %331 = vmatpush1.xpose.msra.mxu0 0.0
        %332 = vmatprep.subr.mxu0 0.0
        %333 = vmatpush1.xpose.msra.mxu0 0.0
        %334 = vmatprep.subr.mxu0 0.0
        %335 = vmatpush1.xpose.msra.mxu0 0.0
        %336 = vmatprep.subr.mxu0 0.0
        %337 = vmatpush1.xpose.msra.mxu0 0.0
        %338 = vmatprep.subr.mxu0 0.0
        %339 = vmatpush1.xpose.msra.mxu0 0.0
        %340 = vmatprep.subr.mxu0 0.0
        %341 = vmatpush1.xpose.msra.mxu0 0.0
        %342 = vmatprep.subr.mxu0 0.0
        %343 = vmatpush1.xpose.msra.mxu0 0.0
        %344 = vmatprep.subr.mxu0 0.0
        %345 = vmatpush1.xpose.msra.mxu0 0.0
        %346 = vmatprep.subr.mxu0 0.0
        %347 = vmatpush1.xpose.msra.mxu0 0.0
        %348 = vmatprep.subr.mxu0 0.0
        %349 = vmatpush1.xpose.msra.mxu0 0.0
        %350 = vmatprep.subr.mxu0 0.0
        %351 = vmatpush1.xpose.msra.mxu0 0.0
        %352 = vmatprep.subr.mxu0 0.0
        %353 = vmatpush1.xpose.msra.mxu0 0.0
        %354 = vmatprep.subr.mxu0 0.0
        %355 = vmatpush1.xpose.msra.mxu0 0.0
        %356 = vmatprep.subr.mxu0 0.0
        %357 = vmatpush1.xpose.msra.mxu0 %v324
        %358 = vmatprep.subr.mxu0 0.0
        %359 = vmatpush2.xpose.msra.mxu0 0.0
        %360 = vmatprep.subr.mxu0 0.0
        %361 = vmatpush2.xpose.msra.mxu0 0.0
        %362 = vmatprep.subr.mxu0 0.0
        %363 = vmatpush2.xpose.msra.mxu0 0.0
        %364 = vmatprep.subr.mxu0 0.0
        %365 = vmatpush2.xpose.msra.mxu0 0.0
        %366 = vmatprep.subr.mxu0 0.0
        %367 = vmatpush2.xpose.msra.mxu0 0.0
        %368 = vmatprep.subr.mxu0 0.0
        %369 = vmatpush2.xpose.msra.mxu0 0.0
        %370 = vmatprep.subr.mxu0 0.0
        %371 = vmatpush2.xpose.msra.mxu0 0.0
        %372 = vmatprep.subr.mxu0 0.0
        %373 = vmatpush2.xpose.msra.mxu0 0.0
        %374 = vmatprep.subr.mxu0 0.0
        %375 = vmatpush2.xpose.msra.mxu0 0.0
        %376 = vmatprep.subr.mxu0 0.0
        %377 = vmatpush2.xpose.msra.mxu0 0.0
        %378 = vmatprep.subr.mxu0 0.0
        %379 = vmatpush2.xpose.msra.mxu0 0.0
        %380 = vmatprep.subr.mxu0 0.0
        %381 = vmatpush2.xpose.msra.mxu0 0.0
        %382 = vmatprep.subr.mxu0 0.0
        %383 = vmatpush2.xpose.msra.mxu0 0.0
        %384 = vmatprep.subr.mxu0 0.0
        %385 = vmatpush2.xpose.msra.mxu0 0.0
        %386 = vmatprep.subr.mxu0 0.0
        %387 = vmatpush2.xpose.msra.mxu0 0.0
        %388 = vmatprep.subr.mxu0 0.0
        %389 = vmatpush2.xpose.msra.mxu0 0.0
        %390 = vmatprep.mubr.f32.mxu0 0.0
        %391 = vmatmul.mubr.f32.gmra.mxu0 %v322
        %v392 = vpop.f32.mrf.mxu0
        %v393 = vadd.f32 0.0, %v392
        %v394 = vpop.f32.mrf.mxu0
        %395 = vdwg.mxu0
        %vm396 = vcmask 64512
        %v397 = vsel %vm396, %v393, -inf
        %398 = vmax.xlane.f32.xlu0 %v397
        %v399 = vpop.xlane.xlu0 %398
        %v400 = vsub.f32 %v393, %v399
        %v401 = vmul.f32 %v400, 1.442695
        %v402 = vpow.pop %v401
        %v403 = vsel %vm396, %v402, 0.0
        %404 = vadd.xlane.f32.xlu0 %v403
        %v405 = vpop.xlane.xlu0 %404
        %v406 = vrcp.pop %v405
        %v407 = vmul.f32 %v402, %v406
        %v409 = vsel %vm396, %v407, 0
        %411 = vmatprep.subr.mxu0 0.0
        %412 = vmatpush1.msra.mxu0 0.0
        %413 = vmatprep.subr.mxu0 0.0
        %414 = vmatpush1.msra.mxu0 0.0
        %415 = vmatprep.subr.mxu0 0.0
        %416 = vmatpush1.msra.mxu0 0.0
        %417 = vmatprep.subr.mxu0 0.0
        %418 = vmatpush1.msra.mxu0 0.0
        %419 = vmatprep.subr.mxu0 0.0
        %420 = vmatpush1.msra.mxu0 0.0
        %421 = vmatprep.subr.mxu0 0.0
        %422 = vmatpush1.msra.mxu0 0.0
        %423 = vmatprep.subr.mxu0 0.0
        %424 = vmatpush1.msra.mxu0 0.0
        %425 = vmatprep.subr.mxu0 0.0
        %426 = vmatpush1.msra.mxu0 0.0
        %427 = vmatprep.subr.mxu0 0.0
        %428 = vmatpush1.msra.mxu0 0.0
        %429 = vmatprep.subr.mxu0 0.0
        %430 = vmatpush1.msra.mxu0 0.0
        %431 = vmatprep.subr.mxu0 0.0
        %432 = vmatpush1.msra.mxu0 0.0
        %433 = vmatprep.subr.mxu0 0.0
        %434 = vmatpush1.msra.mxu0 0.0
        %435 = vmatprep.subr.mxu0 0.0
        %436 = vmatpush1.msra.mxu0 0.0
        %437 = vmatprep.subr.mxu0 0.0
        %438 = vmatpush1.msra.mxu0 0.0
        %439 = vmatprep.subr.mxu0 0.0
        %440 = vmatpush1.msra.mxu0 0.0
        %441 = vmatprep.subr.mxu0 0.0
        %442 = vmatpush1.msra.mxu0 %v314
        %443 = vmatprep.subr.mxu0 0.0
        %444 = vmatpush2.msra.mxu0 0.0
        %445 = vmatprep.subr.mxu0 0.0
        %446 = vmatpush2.msra.mxu0 0.0
        %447 = vmatprep.subr.mxu0 0.0
        %448 = vmatpush2.msra.mxu0 0.0
        %449 = vmatprep.subr.mxu0 0.0
        %450 = vmatpush2.msra.mxu0 0.0
        %451 = vmatprep.subr.mxu0 0.0
        %452 = vmatpush2.msra.mxu0 0.0
        %453 = vmatprep.subr.mxu0 0.0
        %454 = vmatpush2.msra.mxu0 0.0
        %455 = vmatprep.subr.mxu0 0.0
        %456 = vmatpush2.msra.mxu0 0.0
        %457 = vmatprep.subr.mxu0 0.0
        %458 = vmatpush2.msra.mxu0 0.0
        %459 = vmatprep.subr.mxu0 0.0
        %460 = vmatpush2.msra.mxu0 0.0
        %461 = vmatprep.subr.mxu0 0.0
        %462 = vmatpush2.msra.mxu0 0.0
        %463 = vmatprep.subr.mxu0 0.0
        %464 = vmatpush2.msra.mxu0 0.0
        %465 = vmatprep.subr.mxu0 0.0
        %466 = vmatpush2.msra.mxu0 0.0
        %467 = vmatprep.subr.mxu0 0.0
        %468 = vmatpush2.msra.mxu0 0.0
        %469 = vmatprep.subr.mxu0 0.0
        %470 = vmatpush2.msra.mxu0 0.0
        %471 = vmatprep.subr.mxu0 0.0
        %472 = vmatpush2.msra.mxu0 0.0
        %473 = vmatprep.subr.mxu0 0.0
        %474 = vmatpush2.msra.mxu0 0.0
        %475 = vmatprep.mubr.f32.mxu0 0.0
        %476 = vmatmul.mubr.f32.gmra.mxu0 %v409
        %v477 = vpop.f32.mrf.mxu0
        %v478 = vadd.f32 0.0, %v477
        %v479 = vpop.f32.mrf.mxu0
        %480 = vdwg.mxu0
        %481 = vrot.lane.b32.xlu0 %v316, 112
        %v482 = vpop.permute.xlu0 %481
        %483 = vrot.lane.b32.xlu0 %v312, 48
        %v484 = vpop.permute.xlu0 %483
        %v485 = vsel %vm320, %v482, 0
        %v487 = vsel %vm320, %v484, 0
        %489 = vmatprep.subr.mxu0 0.0
        %490 = vmatpush1.xpose.msra.mxu0 0.0
        %491 = vmatprep.subr.mxu0 0.0
        %492 = vmatpush1.xpose.msra.mxu0 0.0
        %493 = vmatprep.subr.mxu0 0.0
        %494 = vmatpush1.xpose.msra.mxu0 0.0
        %495 = vmatprep.subr.mxu0 0.0
        %496 = vmatpush1.xpose.msra.mxu0 0.0
        %497 = vmatprep.subr.mxu0 0.0
        %498 = vmatpush1.xpose.msra.mxu0 0.0
        %499 = vmatprep.subr.mxu0 0.0
        %500 = vmatpush1.xpose.msra.mxu0 0.0
        %501 = vmatprep.subr.mxu0 0.0
        %502 = vmatpush1.xpose.msra.mxu0 0.0
        %503 = vmatprep.subr.mxu0 0.0
        %504 = vmatpush1.xpose.msra.mxu0 0.0
        %505 = vmatprep.subr.mxu0 0.0
        %506 = vmatpush1.xpose.msra.mxu0 0.0
        %507 = vmatprep.subr.mxu0 0.0
        %508 = vmatpush1.xpose.msra.mxu0 0.0
        %509 = vmatprep.subr.mxu0 0.0
        %510 = vmatpush1.xpose.msra.mxu0 0.0
        %511 = vmatprep.subr.mxu0 0.0
        %512 = vmatpush1.xpose.msra.mxu0 0.0
        %513 = vmatprep.subr.mxu0 0.0
        %514 = vmatpush1.xpose.msra.mxu0 0.0
        %515 = vmatprep.subr.mxu0 0.0
        %516 = vmatpush1.xpose.msra.mxu0 0.0
        %517 = vmatprep.subr.mxu0 0.0
        %518 = vmatpush1.xpose.msra.mxu0 0.0
        %519 = vmatprep.subr.mxu0 0.0
        %520 = vmatpush1.xpose.msra.mxu0 %v487
        %521 = vmatprep.subr.mxu0 0.0
        %522 = vmatpush2.xpose.msra.mxu0 0.0
        %523 = vmatprep.subr.mxu0 0.0
        %524 = vmatpush2.xpose.msra.mxu0 0.0
        %525 = vmatprep.subr.mxu0 0.0
        %526 = vmatpush2.xpose.msra.mxu0 0.0
        %527 = vmatprep.subr.mxu0 0.0
        %528 = vmatpush2.xpose.msra.mxu0 0.0
        %529 = vmatprep.subr.mxu0 0.0
        %530 = vmatpush2.xpose.msra.mxu0 0.0
        %531 = vmatprep.subr.mxu0 0.0
        %532 = vmatpush2.xpose.msra.mxu0 0.0
        %533 = vmatprep.subr.mxu0 0.0
        %534 = vmatpush2.xpose.msra.mxu0 0.0
        %535 = vmatprep.subr.mxu0 0.0
        %536 = vmatpush2.xpose.msra.mxu0 0.0
        %537 = vmatprep.subr.mxu0 0.0
        %538 = vmatpush2.xpose.msra.mxu0 0.0
        %539 = vmatprep.subr.mxu0 0.0
        %540 = vmatpush2.xpose.msra.mxu0 0.0
        %541 = vmatprep.subr.mxu0 0.0
        %542 = vmatpush2.xpose.msra.mxu0 0.0
        %543 = vmatprep.subr.mxu0 0.0
        %544 = vmatpush2.xpose.msra.mxu0 0.0
        %545 = vmatprep.subr.mxu0 0.0
        %546 = vmatpush2.xpose.msra.mxu0 0.0
        %547 = vmatprep.subr.mxu0 0.0
        %548 = vmatpush2.xpose.msra.mxu0 0.0
        %549 = vmatprep.subr.mxu0 0.0
        %550 = vmatpush2.xpose.msra.mxu0 0.0
        %551 = vmatprep.subr.mxu0 0.0
        %552 = vmatpush2.xpose.msra.mxu0 0.0
        %553 = vmatprep.mubr.f32.mxu0 0.0
        %554 = vmatmul.mubr.f32.gmra.mxu0 %v485
        %v555 = vpop.f32.mrf.mxu0
        %v556 = vadd.f32 0.0, %v555
        %v557 = vpop.f32.mrf.mxu0
        %558 = vdwg.mxu0
        %v559 = vsel %vm396, %v556, -inf
        %560 = vmax.xlane.f32.xlu0 %v559
        %v561 = vpop.xlane.xlu0 %560
        %v562 = vsub.f32 %v556, %v561
        %v563 = vmul.f32 %v562, 1.442695
        %v564 = vpow.pop %v563
        %v565 = vsel %vm396, %v564, 0.0
        %566 = vadd.xlane.f32.xlu0 %v565
        %v567 = vpop.xlane.xlu0 %566
        %v568 = vrcp.pop %v567
        %v569 = vmul.f32 %v564, %v568
        %571 = vrot.lane.b32.xlu0 %v314, 112
        %v572 = vpop.permute.xlu0 %571
        %v575 = vsel %vm396, %v569, 0
        %577 = vmatprep.subr.mxu0 0.0
        %578 = vmatpush1.msra.mxu0 0.0
        %579 = vmatprep.subr.mxu0 0.0
        %580 = vmatpush1.msra.mxu0 0.0
        %581 = vmatprep.subr.mxu0 0.0
        %582 = vmatpush1.msra.mxu0 0.0
        %583 = vmatprep.subr.mxu0 0.0
        %584 = vmatpush1.msra.mxu0 0.0
        %585 = vmatprep.subr.mxu0 0.0
        %586 = vmatpush1.msra.mxu0 0.0
        %587 = vmatprep.subr.mxu0 0.0
        %588 = vmatpush1.msra.mxu0 0.0
        %589 = vmatprep.subr.mxu0 0.0
        %590 = vmatpush1.msra.mxu0 0.0
        %591 = vmatprep.subr.mxu0 0.0
        %592 = vmatpush1.msra.mxu0 0.0
        %593 = vmatprep.subr.mxu0 0.0
        %594 = vmatpush1.msra.mxu0 0.0
        %595 = vmatprep.subr.mxu0 0.0
        %596 = vmatpush1.msra.mxu0 0.0
        %597 = vmatprep.subr.mxu0 0.0
        %598 = vmatpush1.msra.mxu0 0.0
        %599 = vmatprep.subr.mxu0 0.0
        %600 = vmatpush1.msra.mxu0 0.0
        %601 = vmatprep.subr.mxu0 0.0
        %602 = vmatpush1.msra.mxu0 0.0
        %603 = vmatprep.subr.mxu0 0.0
        %604 = vmatpush1.msra.mxu0 0.0
        %605 = vmatprep.subr.mxu0 0.0
        %606 = vmatpush1.msra.mxu0 0.0
        %607 = vmatprep.subr.mxu0 0.0
        %608 = vmatpush1.msra.mxu0 %v572
        %609 = vmatprep.subr.mxu0 0.0
        %610 = vmatpush2.msra.mxu0 0.0
        %611 = vmatprep.subr.mxu0 0.0
        %612 = vmatpush2.msra.mxu0 0.0
        %613 = vmatprep.subr.mxu0 0.0
        %614 = vmatpush2.msra.mxu0 0.0
        %615 = vmatprep.subr.mxu0 0.0
        %616 = vmatpush2.msra.mxu0 0.0
        %617 = vmatprep.subr.mxu0 0.0
        %618 = vmatpush2.msra.mxu0 0.0
        %619 = vmatprep.subr.mxu0 0.0
        %620 = vmatpush2.msra.mxu0 0.0
        %621 = vmatprep.subr.mxu0 0.0
        %622 = vmatpush2.msra.mxu0 0.0
        %623 = vmatprep.subr.mxu0 0.0
        %624 = vmatpush2.msra.mxu0 0.0
        %625 = vmatprep.subr.mxu0 0.0
        %626 = vmatpush2.msra.mxu0 0.0
        %627 = vmatprep.subr.mxu0 0.0
        %628 = vmatpush2.msra.mxu0 0.0
        %629 = vmatprep.subr.mxu0 0.0
        %630 = vmatpush2.msra.mxu0 0.0
        %631 = vmatprep.subr.mxu0 0.0
        %632 = vmatpush2.msra.mxu0 0.0
        %633 = vmatprep.subr.mxu0 0.0
        %634 = vmatpush2.msra.mxu0 0.0
        %635 = vmatprep.subr.mxu0 0.0
        %636 = vmatpush2.msra.mxu0 0.0
        %637 = vmatprep.subr.mxu0 0.0
        %638 = vmatpush2.msra.mxu0 0.0
        %639 = vmatprep.subr.mxu0 0.0
        %640 = vmatpush2.msra.mxu0 0.0
        %641 = vmatprep.mubr.f32.mxu0 0.0
        %642 = vmatmul.mubr.f32.gmra.mxu0 %v575
        %v643 = vpop.f32.mrf.mxu0
        %v644 = vadd.f32 0.0, %v643
        %v645 = vpop.f32.mrf.mxu0
        %646 = vdwg.mxu0
        %647 = vrot.lane.b32.xlu0 %v316, 96
        %v648 = vpop.permute.xlu0 %647
        %649 = vrot.lane.b32.xlu0 %v312, 32
        %v650 = vpop.permute.xlu0 %649
        %v651 = vsel %vm320, %v648, 0
        %v653 = vsel %vm320, %v650, 0
        %655 = vmatprep.subr.mxu0 0.0
        %656 = vmatpush1.xpose.msra.mxu0 0.0
        %657 = vmatprep.subr.mxu0 0.0
        %658 = vmatpush1.xpose.msra.mxu0 0.0
        %659 = vmatprep.subr.mxu0 0.0
        %660 = vmatpush1.xpose.msra.mxu0 0.0
        %661 = vmatprep.subr.mxu0 0.0
        %662 = vmatpush1.xpose.msra.mxu0 0.0
        %663 = vmatprep.subr.mxu0 0.0
        %664 = vmatpush1.xpose.msra.mxu0 0.0
        %665 = vmatprep.subr.mxu0 0.0
        %666 = vmatpush1.xpose.msra.mxu0 0.0
        %667 = vmatprep.subr.mxu0 0.0
        %668 = vmatpush1.xpose.msra.mxu0 0.0
        %669 = vmatprep.subr.mxu0 0.0
        %670 = vmatpush1.xpose.msra.mxu0 0.0
        %671 = vmatprep.subr.mxu0 0.0
        %672 = vmatpush1.xpose.msra.mxu0 0.0
        %673 = vmatprep.subr.mxu0 0.0
        %674 = vmatpush1.xpose.msra.mxu0 0.0
        %675 = vmatprep.subr.mxu0 0.0
        %676 = vmatpush1.xpose.msra.mxu0 0.0
        %677 = vmatprep.subr.mxu0 0.0
        %678 = vmatpush1.xpose.msra.mxu0 0.0
        %679 = vmatprep.subr.mxu0 0.0
        %680 = vmatpush1.xpose.msra.mxu0 0.0
        %681 = vmatprep.subr.mxu0 0.0
        %682 = vmatpush1.xpose.msra.mxu0 0.0
        %683 = vmatprep.subr.mxu0 0.0
        %684 = vmatpush1.xpose.msra.mxu0 0.0
        %685 = vmatprep.subr.mxu0 0.0
        %686 = vmatpush1.xpose.msra.mxu0 %v653
        %687 = vmatprep.subr.mxu0 0.0
        %688 = vmatpush2.xpose.msra.mxu0 0.0
        %689 = vmatprep.subr.mxu0 0.0
        %690 = vmatpush2.xpose.msra.mxu0 0.0
        %691 = vmatprep.subr.mxu0 0.0
        %692 = vmatpush2.xpose.msra.mxu0 0.0
        %693 = vmatprep.subr.mxu0 0.0
        %694 = vmatpush2.xpose.msra.mxu0 0.0
        %695 = vmatprep.subr.mxu0 0.0
        %696 = vmatpush2.xpose.msra.mxu0 0.0
        %697 = vmatprep.subr.mxu0 0.0
        %698 = vmatpush2.xpose.msra.mxu0 0.0
        %699 = vmatprep.subr.mxu0 0.0
        %700 = vmatpush2.xpose.msra.mxu0 0.0
        %701 = vmatprep.subr.mxu0 0.0
        %702 = vmatpush2.xpose.msra.mxu0 0.0
        %703 = vmatprep.subr.mxu0 0.0
        %704 = vmatpush2.xpose.msra.mxu0 0.0
        %705 = vmatprep.subr.mxu0 0.0
        %706 = vmatpush2.xpose.msra.mxu0 0.0
        %707 = vmatprep.subr.mxu0 0.0
        %708 = vmatpush2.xpose.msra.mxu0 0.0
        %709 = vmatprep.subr.mxu0 0.0
        %710 = vmatpush2.xpose.msra.mxu0 0.0
        %711 = vmatprep.subr.mxu0 0.0
        %712 = vmatpush2.xpose.msra.mxu0 0.0
        %713 = vmatprep.subr.mxu0 0.0
        %714 = vmatpush2.xpose.msra.mxu0 0.0
        %715 = vmatprep.subr.mxu0 0.0
        %716 = vmatpush2.xpose.msra.mxu0 0.0
        %717 = vmatprep.subr.mxu0 0.0
        %718 = vmatpush2.xpose.msra.mxu0 0.0
        %719 = vmatprep.mubr.f32.mxu0 0.0
        %720 = vmatmul.mubr.f32.gmra.mxu0 %v651
        %v721 = vpop.f32.mrf.mxu0
        %v722 = vadd.f32 0.0, %v721
        %v723 = vpop.f32.mrf.mxu0
        %724 = vdwg.mxu0
        %v725 = vsel %vm396, %v722, -inf
        %726 = vmax.xlane.f32.xlu0 %v725
        %v727 = vpop.xlane.xlu0 %726
        %v728 = vsub.f32 %v722, %v727
        %v729 = vmul.f32 %v728, 1.442695
        %v730 = vpow.pop %v729
        %v731 = vsel %vm396, %v730, 0.0
        %732 = vadd.xlane.f32.xlu0 %v731
        %v733 = vpop.xlane.xlu0 %732
        %v734 = vrcp.pop %v733
        %v735 = vmul.f32 %v730, %v734
        %736 = vrot.lane.b32.xlu0 %v314, 96
        %v737 = vpop.permute.xlu0 %736
        %v740 = vsel %vm396, %v735, 0
        %742 = vmatprep.subr.mxu0 0.0
        %743 = vmatpush1.msra.mxu0 0.0
        %744 = vmatprep.subr.mxu0 0.0
        %745 = vmatpush1.msra.mxu0 0.0
        %746 = vmatprep.subr.mxu0 0.0
        %747 = vmatpush1.msra.mxu0 0.0
        %748 = vmatprep.subr.mxu0 0.0
        %749 = vmatpush1.msra.mxu0 0.0
        %750 = vmatprep.subr.mxu0 0.0
        %751 = vmatpush1.msra.mxu0 0.0
        %752 = vmatprep.subr.mxu0 0.0
        %753 = vmatpush1.msra.mxu0 0.0
        %754 = vmatprep.subr.mxu0 0.0
        %755 = vmatpush1.msra.mxu0 0.0
        %756 = vmatprep.subr.mxu0 0.0
        %757 = vmatpush1.msra.mxu0 0.0
        %758 = vmatprep.subr.mxu0 0.0
        %759 = vmatpush1.msra.mxu0 0.0
        %760 = vmatprep.subr.mxu0 0.0
        %761 = vmatpush1.msra.mxu0 0.0
        %762 = vmatprep.subr.mxu0 0.0
        %763 = vmatpush1.msra.mxu0 0.0
        %764 = vmatprep.subr.mxu0 0.0
        %765 = vmatpush1.msra.mxu0 0.0
        %766 = vmatprep.subr.mxu0 0.0
        %767 = vmatpush1.msra.mxu0 0.0
        %768 = vmatprep.subr.mxu0 0.0
        %769 = vmatpush1.msra.mxu0 0.0
        %770 = vmatprep.subr.mxu0 0.0
        %771 = vmatpush1.msra.mxu0 0.0
        %772 = vmatprep.subr.mxu0 0.0
        %773 = vmatpush1.msra.mxu0 %v737
        %774 = vmatprep.subr.mxu0 0.0
        %775 = vmatpush2.msra.mxu0 0.0
        %776 = vmatprep.subr.mxu0 0.0
        %777 = vmatpush2.msra.mxu0 0.0
        %778 = vmatprep.subr.mxu0 0.0
        %779 = vmatpush2.msra.mxu0 0.0
        %780 = vmatprep.subr.mxu0 0.0
        %781 = vmatpush2.msra.mxu0 0.0
        %782 = vmatprep.subr.mxu0 0.0
        %783 = vmatpush2.msra.mxu0 0.0
        %784 = vmatprep.subr.mxu0 0.0
        %785 = vmatpush2.msra.mxu0 0.0
        %786 = vmatprep.subr.mxu0 0.0
        %787 = vmatpush2.msra.mxu0 0.0
        %788 = vmatprep.subr.mxu0 0.0
        %789 = vmatpush2.msra.mxu0 0.0
        %790 = vmatprep.subr.mxu0 0.0
        %791 = vmatpush2.msra.mxu0 0.0
        %792 = vmatprep.subr.mxu0 0.0
        %793 = vmatpush2.msra.mxu0 0.0
        %794 = vmatprep.subr.mxu0 0.0
        %795 = vmatpush2.msra.mxu0 0.0
        %796 = vmatprep.subr.mxu0 0.0
        %797 = vmatpush2.msra.mxu0 0.0
        %798 = vmatprep.subr.mxu0 0.0
        %799 = vmatpush2.msra.mxu0 0.0
        %800 = vmatprep.subr.mxu0 0.0
        %801 = vmatpush2.msra.mxu0 0.0
        %802 = vmatprep.subr.mxu0 0.0
        %803 = vmatpush2.msra.mxu0 0.0
        %804 = vmatprep.subr.mxu0 0.0
        %805 = vmatpush2.msra.mxu0 0.0
        %806 = vmatprep.mubr.f32.mxu0 0.0
        %807 = vmatmul.mubr.f32.gmra.mxu0 %v740
        %v808 = vpop.f32.mrf.mxu0
        %v809 = vadd.f32 0.0, %v808
        %v810 = vpop.f32.mrf.mxu0
        %811 = vdwg.mxu0
        %812 = vrot.lane.b32.xlu0 %v316, 80
        %v813 = vpop.permute.xlu0 %812
        %814 = vrot.lane.b32.xlu0 %v312, 16
        %v815 = vpop.permute.xlu0 %814
        %v816 = vsel %vm320, %v813, 0
        %v818 = vsel %vm320, %v815, 0
        %820 = vmatprep.subr.mxu0 0.0
        %821 = vmatpush1.xpose.msra.mxu0 0.0
        %822 = vmatprep.subr.mxu0 0.0
        %823 = vmatpush1.xpose.msra.mxu0 0.0
        %824 = vmatprep.subr.mxu0 0.0
        %825 = vmatpush1.xpose.msra.mxu0 0.0
        %826 = vmatprep.subr.mxu0 0.0
        %827 = vmatpush1.xpose.msra.mxu0 0.0
        %828 = vmatprep.subr.mxu0 0.0
        %829 = vmatpush1.xpose.msra.mxu0 0.0
        %830 = vmatprep.subr.mxu0 0.0
        %831 = vmatpush1.xpose.msra.mxu0 0.0
        %832 = vmatprep.subr.mxu0 0.0
        %833 = vmatpush1.xpose.msra.mxu0 0.0
        %834 = vmatprep.subr.mxu0 0.0
        %835 = vmatpush1.xpose.msra.mxu0 0.0
        %836 = vmatprep.subr.mxu0 0.0
        %837 = vmatpush1.xpose.msra.mxu0 0.0
        %838 = vmatprep.subr.mxu0 0.0
        %839 = vmatpush1.xpose.msra.mxu0 0.0
        %840 = vmatprep.subr.mxu0 0.0
        %841 = vmatpush1.xpose.msra.mxu0 0.0
        %842 = vmatprep.subr.mxu0 0.0
        %843 = vmatpush1.xpose.msra.mxu0 0.0
        %844 = vmatprep.subr.mxu0 0.0
        %845 = vmatpush1.xpose.msra.mxu0 0.0
        %846 = vmatprep.subr.mxu0 0.0
        %847 = vmatpush1.xpose.msra.mxu0 0.0
        %848 = vmatprep.subr.mxu0 0.0
        %849 = vmatpush1.xpose.msra.mxu0 0.0
        %850 = vmatprep.subr.mxu0 0.0
        %851 = vmatpush1.xpose.msra.mxu0 %v818
        %852 = vmatprep.subr.mxu0 0.0
        %853 = vmatpush2.xpose.msra.mxu0 0.0
        %854 = vmatprep.subr.mxu0 0.0
        %855 = vmatpush2.xpose.msra.mxu0 0.0
        %856 = vmatprep.subr.mxu0 0.0
        %857 = vmatpush2.xpose.msra.mxu0 0.0
        %858 = vmatprep.subr.mxu0 0.0
        %859 = vmatpush2.xpose.msra.mxu0 0.0
        %860 = vmatprep.subr.mxu0 0.0
        %861 = vmatpush2.xpose.msra.mxu0 0.0
        %862 = vmatprep.subr.mxu0 0.0
        %863 = vmatpush2.xpose.msra.mxu0 0.0
        %864 = vmatprep.subr.mxu0 0.0
        %865 = vmatpush2.xpose.msra.mxu0 0.0
        %866 = vmatprep.subr.mxu0 0.0
        %867 = vmatpush2.xpose.msra.mxu0 0.0
        %868 = vmatprep.subr.mxu0 0.0
        %869 = vmatpush2.xpose.msra.mxu0 0.0
        %870 = vmatprep.subr.mxu0 0.0
        %871 = vmatpush2.xpose.msra.mxu0 0.0
        %872 = vmatprep.subr.mxu0 0.0
        %873 = vmatpush2.xpose.msra.mxu0 0.0
        %874 = vmatprep.subr.mxu0 0.0
        %875 = vmatpush2.xpose.msra.mxu0 0.0
        %876 = vmatprep.subr.mxu0 0.0
        %877 = vmatpush2.xpose.msra.mxu0 0.0
        %878 = vmatprep.subr.mxu0 0.0
        %879 = vmatpush2.xpose.msra.mxu0 0.0
        %880 = vmatprep.subr.mxu0 0.0
        %881 = vmatpush2.xpose.msra.mxu0 0.0
        %882 = vmatprep.subr.mxu0 0.0
        %883 = vmatpush2.xpose.msra.mxu0 0.0
        %884 = vmatprep.mubr.f32.mxu0 0.0
        %885 = vmatmul.mubr.f32.gmra.mxu0 %v816
        %v886 = vpop.f32.mrf.mxu0
        %v887 = vadd.f32 0.0, %v886
        %v888 = vpop.f32.mrf.mxu0
        %889 = vdwg.mxu0
        %v890 = vsel %vm396, %v887, -inf
        %891 = vmax.xlane.f32.xlu0 %v890
        %v892 = vpop.xlane.xlu0 %891
        %v893 = vsub.f32 %v887, %v892
        %v894 = vmul.f32 %v893, 1.442695
        %v895 = vpow.pop %v894
        %v896 = vsel %vm396, %v895, 0.0
        %897 = vadd.xlane.f32.xlu0 %v896
        %v898 = vpop.xlane.xlu0 %897
        %v899 = vrcp.pop %v898
        %v900 = vmul.f32 %v895, %v899
        %901 = vrot.lane.b32.xlu0 %v314, 80
        %v902 = vpop.permute.xlu0 %901
        %v905 = vsel %vm396, %v900, 0
        %907 = vmatprep.subr.mxu0 0.0
        %908 = vmatpush1.msra.mxu0 0.0
        %909 = vmatprep.subr.mxu0 0.0
        %910 = vmatpush1.msra.mxu0 0.0
        %911 = vmatprep.subr.mxu0 0.0
        %912 = vmatpush1.msra.mxu0 0.0
        %913 = vmatprep.subr.mxu0 0.0
        %914 = vmatpush1.msra.mxu0 0.0
        %915 = vmatprep.subr.mxu0 0.0
        %916 = vmatpush1.msra.mxu0 0.0
        %917 = vmatprep.subr.mxu0 0.0
        %918 = vmatpush1.msra.mxu0 0.0
        %919 = vmatprep.subr.mxu0 0.0
        %920 = vmatpush1.msra.mxu0 0.0
        %921 = vmatprep.subr.mxu0 0.0
        %922 = vmatpush1.msra.mxu0 0.0
        %923 = vmatprep.subr.mxu0 0.0
        %924 = vmatpush1.msra.mxu0 0.0
        %925 = vmatprep.subr.mxu0 0.0
        %926 = vmatpush1.msra.mxu0 0.0
        %927 = vmatprep.subr.mxu0 0.0
        %928 = vmatpush1.msra.mxu0 0.0
        %929 = vmatprep.subr.mxu0 0.0
        %930 = vmatpush1.msra.mxu0 0.0
        %931 = vmatprep.subr.mxu0 0.0
        %932 = vmatpush1.msra.mxu0 0.0
        %933 = vmatprep.subr.mxu0 0.0
        %934 = vmatpush1.msra.mxu0 0.0
        %935 = vmatprep.subr.mxu0 0.0
        %936 = vmatpush1.msra.mxu0 0.0
        %937 = vmatprep.subr.mxu0 0.0
        %938 = vmatpush1.msra.mxu0 %v902
        %939 = vmatprep.subr.mxu0 0.0
        %940 = vmatpush2.msra.mxu0 0.0
        %941 = vmatprep.subr.mxu0 0.0
        %942 = vmatpush2.msra.mxu0 0.0
        %943 = vmatprep.subr.mxu0 0.0
        %944 = vmatpush2.msra.mxu0 0.0
        %945 = vmatprep.subr.mxu0 0.0
        %946 = vmatpush2.msra.mxu0 0.0
        %947 = vmatprep.subr.mxu0 0.0
        %948 = vmatpush2.msra.mxu0 0.0
        %949 = vmatprep.subr.mxu0 0.0
        %950 = vmatpush2.msra.mxu0 0.0
        %951 = vmatprep.subr.mxu0 0.0
        %952 = vmatpush2.msra.mxu0 0.0
        %953 = vmatprep.subr.mxu0 0.0
        %954 = vmatpush2.msra.mxu0 0.0
        %955 = vmatprep.subr.mxu0 0.0
        %956 = vmatpush2.msra.mxu0 0.0
        %957 = vmatprep.subr.mxu0 0.0
        %958 = vmatpush2.msra.mxu0 0.0
        %959 = vmatprep.subr.mxu0 0.0
        %960 = vmatpush2.msra.mxu0 0.0
        %961 = vmatprep.subr.mxu0 0.0
        %962 = vmatpush2.msra.mxu0 0.0
        %963 = vmatprep.subr.mxu0 0.0
        %964 = vmatpush2.msra.mxu0 0.0
        %965 = vmatprep.subr.mxu0 0.0
        %966 = vmatpush2.msra.mxu0 0.0
        %967 = vmatprep.subr.mxu0 0.0
        %968 = vmatpush2.msra.mxu0 0.0
        %969 = vmatprep.subr.mxu0 0.0
        %970 = vmatpush2.msra.mxu0 0.0
        %971 = vmatprep.mubr.f32.mxu0 0.0
        %972 = vmatmul.mubr.f32.gmra.mxu0 %v905
        %v973 = vpop.f32.mrf.mxu0
        %v974 = vadd.f32 0.0, %v973
        %v975 = vpop.f32.mrf.mxu0
        %976 = vdwg.mxu0
        %978 = vrot.lane.b32.xlu0 %v644, 16
        %v979 = vpop.permute.xlu0 %978
        %982 = vrot.lane.b32.xlu0 %v809, 32
        %v983 = vpop.permute.xlu0 %982
        %986 = vrot.lane.b32.xlu0 %v974, 48
        %v987 = vpop.permute.xlu0 %986
        %v989 = vsel %vm320, %v478, %v979
        %v990 = vsel %vm241, %v989, %v983
        %vm991 = vcmask 392192
        %v992 = vsel %vm991, %v990, %v987
        %v993 = vld [vmem:[%s3] sm:$0xff]
        %v994 = vld [vmem:[%s3 + $0x8] sm:$0xff]
        %v995 = vld [vmem:[%s3 + $0x10] sm:$0xff]
        %v996 = vld [vmem:[%s3 + $0x18] sm:$0xff]
        %v997 = vld [vmem:[%s3 + $0x20] sm:$0xff]
        %v998 = vld [vmem:[%s3 + $0x28] sm:$0xff]
        %v999 = vld [vmem:[%s3 + $0x30] sm:$0xff]
        %v1000 = vld [vmem:[%s3 + $0x38] sm:$0xff]
        %v1001 = vld [vmem:[%s4] sm:$0x1]
        %v1003 = vlaneseq
        %v1004 = vshrl.u32 %v1003, 7
        %v1005 = vsub.s32 0, %v1004
        %v1006 = vrot.slane %v1001, %v1005
        %vm1008 = vcmask 523264
        %v1010 = vsel %vm1008, %v992, 0
        %1012 = vmatprep.subr.mxu0 0.0
        %1013 = vmatpush1.msra.mxu0 0.0
        %1014 = vmatprep.subr.mxu0 0.0
        %1015 = vmatpush1.msra.mxu0 0.0
        %1016 = vmatprep.subr.mxu0 0.0
        %1017 = vmatpush1.msra.mxu0 0.0
        %1018 = vmatprep.subr.mxu0 0.0
        %1019 = vmatpush1.msra.mxu0 0.0
        %1020 = vmatprep.subr.mxu0 0.0
        %1021 = vmatpush1.msra.mxu0 0.0
        %1022 = vmatprep.subr.mxu0 0.0
        %1023 = vmatpush1.msra.mxu0 0.0
        %1024 = vmatprep.subr.mxu0 0.0
        %1025 = vmatpush1.msra.mxu0 0.0
        %1026 = vmatprep.subr.mxu0 0.0
        %1027 = vmatpush1.msra.mxu0 0.0
        %1028 = vmatprep.subr.mxu0 0.0
        %1029 = vmatpush1.msra.mxu0 %v1000
        %1030 = vmatprep.subr.mxu0 0.0
        %1031 = vmatpush1.msra.mxu0 %v999
        %1032 = vmatprep.subr.mxu0 0.0
        %1033 = vmatpush1.msra.mxu0 %v998
        %1034 = vmatprep.subr.mxu0 0.0
        %1035 = vmatpush1.msra.mxu0 %v997
        %1036 = vmatprep.subr.mxu0 0.0
        %1037 = vmatpush1.msra.mxu0 %v996
        %1038 = vmatprep.subr.mxu0 0.0
        %1039 = vmatpush1.msra.mxu0 %v995
        %1040 = vmatprep.subr.mxu0 0.0
        %1041 = vmatpush1.msra.mxu0 %v994
        %1042 = vmatprep.subr.mxu0 0.0
        %1043 = vmatpush1.msra.mxu0 %v993
        %1044 = vmatprep.subr.mxu0 0.0
        %1045 = vmatpush2.msra.mxu0 0.0
        %1046 = vmatprep.subr.mxu0 0.0
        %1047 = vmatpush2.msra.mxu0 0.0
        %1048 = vmatprep.subr.mxu0 0.0
        %1049 = vmatpush2.msra.mxu0 0.0
        %1050 = vmatprep.subr.mxu0 0.0
        %1051 = vmatpush2.msra.mxu0 0.0
        %1052 = vmatprep.subr.mxu0 0.0
        %1053 = vmatpush2.msra.mxu0 0.0
        %1054 = vmatprep.subr.mxu0 0.0
        %1055 = vmatpush2.msra.mxu0 0.0
        %1056 = vmatprep.subr.mxu0 0.0
        %1057 = vmatpush2.msra.mxu0 0.0
        %1058 = vmatprep.subr.mxu0 0.0
        %1059 = vmatpush2.msra.mxu0 0.0
        %1060 = vmatprep.subr.mxu0 0.0
        %1061 = vmatpush2.msra.mxu0 0.0
        %1062 = vmatprep.subr.mxu0 0.0
        %1063 = vmatpush2.msra.mxu0 0.0
        %1064 = vmatprep.subr.mxu0 0.0
        %1065 = vmatpush2.msra.mxu0 0.0
        %1066 = vmatprep.subr.mxu0 0.0
        %1067 = vmatpush2.msra.mxu0 0.0
        %1068 = vmatprep.subr.mxu0 0.0
        %1069 = vmatpush2.msra.mxu0 0.0
        %1070 = vmatprep.subr.mxu0 0.0
        %1071 = vmatpush2.msra.mxu0 0.0
        %1072 = vmatprep.subr.mxu0 0.0
        %1073 = vmatpush2.msra.mxu0 0.0
        %1074 = vmatprep.subr.mxu0 0.0
        %1075 = vmatpush2.msra.mxu0 0.0
        %1076 = vmatprep.mubr.f32.mxu0 0.0
        %1077 = vmatmul.mubr.f32.gmra.mxu0 %v1010
        %v1078 = vpop.f32.mrf.mxu0
        %v1079 = vadd.f32 %v1006, %v1078
        %v1080 = vpop.f32.mrf.mxu0
        %1081 = vdwg.mxu0
        %1082 = vst.msk [vmem:[%s215] sm:$0xff] %vm241, %v1079
        %s1083 = sand.u32 %s137, 1
        %s1084 = scalar_lea.sflag [#allocation3], %s1083
        %s1085 = sand.u32 %s137, 1
        %s1086 = smul.addr %s1085, 8
        %s1087 = scalar_lea.vmem [#allocation2], %s1086
        // Predicated region
        $region41: #{tpu_custom_call.1} parent=39 // pred_check
          %p1088 = pneg %p147
        $region42: #{tpu_custom_call.1} parent=39 // pred_check_branch
          %1090 = sbr.rel (%p1088) target = $region44
        $region43: #{tpu_custom_call.1} parent=39 // pred_region
          %s1092 = ssub.s32 128, 128
          %1093 = vsyncadd %s1084, %s1092
          %s1094 = smul.addr %s19, 128
          %s1095 = scalar_lea.hbm %s5, %s1094
          %s1097 = sshll.u32 %s1087, 4
          %s1098 = int_to_ptr.vmem [resolvable:$true] %s1097
          %1100 = dma.vmem_to_hbm [thread:$0]  %s1098, 128, %s1095, %s1084
        $region44: #{tpu_custom_call.1} parent=39 // pred_fallthru
          _
      $region40: #{tpu_custom_call.1} parent=5 // pred_fallthru
        _
      %p1101 = scmp.le.s32.totalorder 2, %s14
      // Predicated region
      $region45: #{tpu_custom_call.1} parent=5 // pred_check
        %p1102 = pneg %p1101
      $region46: #{tpu_custom_call.1} parent=5 // pred_check_branch
        %1104 = sbr.rel (%p1102) target = $region48
      $region47: #{tpu_custom_call.1} parent=5 // pred_region
        %s1105 = ssub.s32 %s14, 2
        // Predicated region
        $region49: #{tpu_custom_call.1} parent=47 // pred_check
          %p1106 = pneg %p153
        $region50: #{tpu_custom_call.1} parent=47 // pred_check_branch
          %1108 = sbr.rel (%p1106) target = $region52
        $region51: #{tpu_custom_call.1} parent=47 // pred_region
          %s1109 = sand.u32 %s138, 1
          %s1110 = scalar_lea.sflag [#allocation3], %s1109
          %s1111 = sand.u32 %s138, 1
          %s1112 = smul.addr %s1111, 8
          %s1113 = scalar_lea.vmem [#allocation2], %s1112
          %1114 = dma.done %s1110, 128
        $region52: #{tpu_custom_call.1} parent=47 // pred_fallthru
          _
      $region48: #{tpu_custom_call.1} parent=5 // pred_fallthru
        _
    $region6: #{tpu_custom_call.1} parent=1 // loop_footer
      %s18 = sadd.s32 1, %s14
    $region7: #{tpu_custom_call.1} parent=1 // loop_footer_branch
      %13 = sbr.rel target = $region3
    $region8: #{tpu_custom_call.1} parent=1 // loop_exit
      _
    %1115 = vsyncpa [#allocation3], 1
    %s1116 = scalar_lea.sflag [#allocation3], 1
    %1117 = vsyncpa %s1116, 1

</llo_original>
